<compile_context>
chip_gen: v7x
topology: tpu7x:2x2x1
jax: 0.10.0
libtpu: 0.0.40
codegen_flags: <defaults>
</compile_context>

<pallas_src>
import functools

import jax
import jax.numpy as jnp
from jax.experimental import pallas as pl
from jax.experimental.pallas import tpu as pltpu


def _scale_kernel(x_ref, o_ref, *, scale):
    # x_ref / o_ref: (block_rows, lane) VMEM tiles.  `scale` is a compile-time
    # weak-typed float constant so the add keeps x's dtype (like PyTorch).
    o_ref[...] = x_ref[...] + scale


def _sublane_pack(dtype) -> int:
    # Sublane packing factor: 8 for 4-byte, 16 for 2-byte, 32 for 1-byte types.
    itemsize = jnp.dtype(dtype).itemsize
    if itemsize >= 4:
        return 8
    if itemsize == 2:
        return 16
    return 32


def scale_forward(x: jax.Array, scale: float = 1.0, *,
                  target_block_bytes: int = 8 * 1024 * 1024,
                  min_pallas_bytes: int = 1 * 1024 * 1024,
                  donate_input: bool = False) -> jax.Array:
    """out = x + scale, computed in a Pallas TPU kernel (with XLA fallbacks)."""
    total = x.size
    if total == 0:
        return x

    # Non-float dtypes: PyTorch promotes int + python-float to float; XLA's
    # fused elementwise add handles that promotion in a single HBM pass.
    if not jnp.issubdtype(x.dtype, jnp.floating):
        return x + scale

    itemsize = jnp.dtype(x.dtype).itemsize
    total_bytes = total * itemsize

    # Tiny inputs: pallas_call launch + grid-step overhead dwarfs the work.
    if total_bytes < min_pallas_bytes:
        return x + scale

    # Widest lane dim that exactly divides the element count => no padding and
    # no trailing slice (each of which would add a full extra HBM pass).
    lane = None
    for cand in (2048, 1024, 512, 256, 128):
        if total % cand == 0:
            lane = cand
            break
    if lane is None:
        # Element count not a multiple of 128 (rare): a padded copy or concat
        # epilogue would 2-3x HBM traffic for a purely mem-bound op, so the
        # single-pass fused XLA add is strictly better here.
        return x + scale

    orig_shape = x.shape
    rows = total // lane
    x2d = x.reshape(rows, lane)

    # Large blocks (default ~8 MiB => 32 MiB with in+out double-buffered) keep
    # the ~0.35 us per-step overhead <10% of each step even on v7x.  block_rows
    # stays a multiple of the sublane pack for dense vreg packing.
    pack = _sublane_pack(x.dtype)
    block_rows = max(pack,
                     (target_block_bytes // (lane * itemsize)) // pack * pack)

    if rows <= block_rows:
        # Whole array fits in one block.  For larger arrays still force >=2
        # grid steps so the "parallel" axis shards across v7x's 2 TensorCores.
        if total_bytes >= (2 << 20) and rows >= 2 * pack:
            block_rows = pl.cdiv(pl.cdiv(rows, 2), pack) * pack
        else:
            block_rows = rows  # exact single block, no masking

    grid = (pl.cdiv(rows, block_rows),)

    kernel = functools.partial(_scale_kernel, scale=scale)
    out2d = pl.pallas_call(
        kernel,
        out_shape=jax.ShapeDtypeStruct((rows, lane), x.dtype),
        grid=grid,
        in_specs=[pl.BlockSpec((block_rows, lane), lambda i: (i, 0))],
        out_specs=pl.BlockSpec((block_rows, lane), lambda i: (i, 0)),
        compiler_params=pltpu.CompilerParams(
            # Shards the streaming loop over v7x's 2 TCs; harmless on v5e/v6e.
            dimension_semantics=("parallel",),
            # 32 MiB of pipeline buffers + headroom: above v5e's 16 MiB default
            # scoped limit, below v7x's 64 MiB physical VMEM per TC.
            vmem_limit_bytes=48 * 1024 * 1024,
        ),
        # Advisory: bandwidth-dominated custom call (read + write each element).
        cost_estimate=pl.CostEstimate(
            flops=total, transcendentals=0, bytes_accessed=2 * total_bytes),
        # Elementwise in-place is safe; opt-in so callers that still need x
        # are not clobbered.
        input_output_aliases=({0: 0} if donate_input else {}),
    )(x2d)

    return out2d.reshape(orig_shape)


if __name__ == "__main__":
    key = jax.random.PRNGKey(0)
    scale = 1.0  # deterministic init, matches Scale(scale=1.0)

    # NCHW input, small shape consistent with the module: batch=2, channels=4,
    # spatial=16x16.  min_pallas_bytes=0 forces the Pallas path (otherwise the
    # tiny-input short-circuit would use the plain XLA add).
    x = jax.random.normal(key, (2, 4, 16, 16), dtype=jnp.float32)
    out = jax.block_until_ready(scale_forward(x, scale, min_pallas_bytes=0))
    expected = x + scale
    assert out.shape == x.shape and out.dtype == x.dtype
    assert jnp.allclose(out, expected, atol=1e-6), "f32 mismatch vs reference"

    # A slightly larger f32 case (multi-row slab) and a bf16 case, still small.
    k1, k2 = jax.random.split(key)
    x2 = jax.random.normal(k1, (4, 8, 32, 128), dtype=jnp.float32)
    out2 = jax.block_until_ready(scale_forward(x2, scale, min_pallas_bytes=0))
    assert out2.dtype == x2.dtype
    assert jnp.allclose(out2, x2 + scale, atol=1e-6), "f32 (multi-row) mismatch"

    x3 = jax.random.normal(k2, (2, 8, 16, 128), dtype=jnp.bfloat16)
    out3 = jax.block_until_ready(scale_forward(x3, scale, min_pallas_bytes=0))
    assert out3.dtype == x3.dtype
    assert jnp.allclose(out3.astype(jnp.float32),
                        x3.astype(jnp.float32) + scale,
                        atol=1e-2), "bf16 mismatch vs reference"

    # TODO(synk): `scale` is a plain Python float here; learnable-parameter
    # registration (nn.Parameter bookkeeping) has no Pallas equivalent.
    print("KERNEL_OK")
</pallas_src>

<mosaic_0001>
module attributes {stable_mosaic.version = 11 : i64} {
  func.func @_scale_kernel(%arg0: i32, %arg1: memref<1x2048xf32, #tpu.memory_space<vmem>>, %arg2: memref<1x2048xf32, #tpu.memory_space<vmem>>) attributes {dimension_semantics = [#tpu.dimension_semantics<parallel>], iteration_bounds = array<i64: 1>, scalar_prefetch = 0 : i64, scratch_operands = 0 : i64, tpu.core_type = #tpu.core_type<tc>, window_params = [{transform_indices = @transform_0, window_bounds = array<i64: 1, 2048>}, {transform_indices = @transform_1, window_bounds = array<i64: 1, 2048>}]} {
    %c0 = arith.constant 0 : index
    %c0_0 = arith.constant 0 : index
    %0 = vector.load %arg1[%c0, %c0_0] : memref<1x2048xf32, #tpu.memory_space<vmem>>, vector<1x2048xf32>
    %cst = arith.constant 1.000000e+00 : f32
    %1 = vector.broadcast %cst : f32 to vector<1x2048xf32>
    %2 = arith.addf %0, %1 : vector<1x2048xf32>
    %c0_1 = arith.constant 0 : index
    %c0_2 = arith.constant 0 : index
    %3 = vector.load %arg2[%c0_1, %c0_2] : memref<1x2048xf32, #tpu.memory_space<vmem>>, vector<1x2048xf32>
    tpu.vector_store %arg2[%c0_1, %c0_2], %2 {strides = array<i32>} : memref<1x2048xf32, #tpu.memory_space<vmem>>, vector<1x2048xf32>,
    return
  }
  func.func @transform_0(%arg0: i32) -> (i32, i32) {
    %c0_i32 = arith.constant 0 : i32
    %c0_i32_0 = arith.constant 0 : i32
    return %arg0, %c0_i32 : i32, i32
  }
  func.func @transform_1(%arg0: i32) -> (i32, i32) {
    %c0_i32 = arith.constant 0 : i32
    %c0_i32_0 = arith.constant 0 : i32
    return %arg0, %c0_i32 : i32, i32
  }
}

</mosaic_0001>

<llo_original>
// kernel: tpu_custom_call.1
$region0: #{tpu_custom_call.1}
  #allocation0 [shape = 'u32[]', space=smem, size = 0x4, offset = 0x4, fixed_abs, tag = 'smem constant byte address 0x4 - core index']
  #allocation1 [shape = 'u32[144,128]{1,0:T(1,128)}', space=vmem, size = 0x12000, scoped, tag = 'internal scratch']
  %s0 = inlined_call_operand.hbm [shape: f32[1,2048], index: 0, kind: input, shape index: {}]
  %s1 = inlined_call_operand.hbm [shape: f32[1,2048], index: 1, kind: output, shape index: {}]
  %s2 = sld [smem:[#allocation0]]
  $region18: #{tpu_custom_call.1} parent=0
    _
  %s4 = ssub.s32 1, %s2
  %s5 = scalar_select 0, %s4, %s2
  $region1: #{tpu_custom_call.1} parent=0
    #allocation2 [shape = 'u8[8192]{0}', space=vmem, size = 0x2000, scoped, tag = 'input window, operand 0, single buffered']
    #allocation3 [shape = 's32[1]{0}', space=sflag, size = 0x4, scoped, tag = 'scoped memory for tpu_custom_call.1']
    #allocation4 [shape = 's32[1]{0}', space=sflag, size = 0x4, scoped, tag = 'scoped memory for tpu_custom_call.1']
    #allocation5 [shape = 'u8[8192]{0}', space=vmem, size = 0x2000, scoped, tag = 'output window, operand 0, single buffered']
    %6 = vsyncpa [#allocation3], 0
    %7 = vsyncpa [#allocation4], 0
    // Predicated region
    $region2: #{tpu_custom_call.1} parent=1 // pred_check
      _
    $region3: #{tpu_custom_call.1} parent=1 // pred_check_branch
      %9 = sbr.rel (0) target = $region5
    $region4: #{tpu_custom_call.1} parent=1 // pred_region
      %s11 = ssub.s32 256, 256
      %12 = vsyncadd [#allocation3], %s11
      %s14 = sshll.u32 [#allocation2], 4
      %s15 = int_to_ptr.vmem [resolvable:$true] %s14
      %17 = dma.hbm_to_vmem [thread:$0]  %s0, 256, %s15, [#allocation3]
    $region5: #{tpu_custom_call.1} parent=1 // pred_fallthru
      _
    // Predicated region
    $region6: #{tpu_custom_call.1} parent=1 // pred_check
      _
    $region7: #{tpu_custom_call.1} parent=1 // pred_check_branch
      %19 = sbr.rel (0) target = $region9
    $region8: #{tpu_custom_call.1} parent=1 // pred_region
      %20 = dma.done [#allocation3], 256
    $region9: #{tpu_custom_call.1} parent=1 // pred_fallthru
      _
    %v21 = vld [vmem:[#allocation2] sm:$0xff]
    %v22 = vld [vmem:[#allocation2 + $0x8] sm:$0xff]
    %v23 = vadd.f32 %v21, 1.0
    %v24 = vadd.f32 %v22, 1.0
    %25 = vst [vmem:[#allocation5] sm:$0xff] %v23
    %26 = vst [vmem:[#allocation5 + $0x8] sm:$0xff] %v24
    // Predicated region
    $region10: #{tpu_custom_call.1} parent=1 // pred_check
      _
    $region11: #{tpu_custom_call.1} parent=1 // pred_check_branch
      %28 = sbr.rel (0) target = $region13
    $region12: #{tpu_custom_call.1} parent=1 // pred_region
      %s30 = ssub.s32 256, 256
      %31 = vsyncadd [#allocation4], %s30
      %s33 = sshll.u32 [#allocation5], 4
      %s34 = int_to_ptr.vmem [resolvable:$true] %s33
      %36 = dma.vmem_to_hbm [thread:$0]  %s34, 256, %s1, [#allocation4]
    $region13: #{tpu_custom_call.1} parent=1 // pred_fallthru
      _
    // Predicated region
    $region14: #{tpu_custom_call.1} parent=1 // pred_check
      _
    $region15: #{tpu_custom_call.1} parent=1 // pred_check_branch
      %38 = sbr.rel (0) target = $region17
    $region16: #{tpu_custom_call.1} parent=1 // pred_region
      %39 = dma.done [#allocation4], 256
    $region17: #{tpu_custom_call.1} parent=1 // pred_fallthru
      _
    %40 = vsyncpa [#allocation3], 1
    %41 = vsyncpa [#allocation4], 1

</llo_original>
